<compile_context>
chip_gen: v6e
topology: v6e:2x2x1
jax: 0.10.0
libtpu: 0.0.40
codegen_flags: <defaults>
</compile_context>

<pallas_src>
import functools

import jax
import jax.numpy as jnp
from jax.experimental import pallas as pl
from jax.experimental.pallas import tpu as pltpu

LANE = 128                 # padded feature width (hidden / fused-head / fused-output)
OUT_W = 8                  # real output lanes written to HBM (n_actions + 1 <= OUT_W)
BIAS_ROWS = 8              # 4 bias rows used, padded to a full sublane tile
W1_OFF, W2_OFF, WH_OFF, WO_OFF = 0, LANE, 2 * LANE, 3 * LANE
BIAS_OFF = 4 * LANE
SLAB_ROWS = 4 * LANE + BIAS_ROWS          # 520 rows (multiple of 8)


def _round_up(n, m):
    return (n + m - 1) // m * m


def actor_critic_kernel(x_ref, p_ref, out_ref, *, compute_dtype):
    cd = compute_dtype
    x = x_ref[...]                                   # [TB, obs_p]  (obs_p <= 128)
    k1 = x.shape[-1]

    # Static slices of the single resident parameter slab.
    w1 = p_ref[pl.ds(W1_OFF, k1), :]                 # [obs_p, 128]
    w2 = p_ref[pl.ds(W2_OFF, LANE), :]               # [128, 128]
    wh = p_ref[pl.ds(WH_OFF, LANE), :]               # fused [wa1 || wc1], zero-padded
    wo = p_ref[pl.ds(WO_OFF, LANE), :]               # block-diag [wa2 ; wc2], zero-padded
    bias = p_ref[pl.ds(BIAS_OFF, BIAS_ROWS), :]      # [8, 128]; rows 0..3 used
    b1, b2, bh, bo = bias[0:1, :], bias[1:2, :], bias[2:3, :], bias[3:4, :]

    def mm(a, w):
        return jnp.dot(a.astype(cd), w.astype(cd), preferred_element_type=jnp.float32)

    # Shared MLP (padded lanes stay exactly zero because W/b pads are zero).
    h = jnp.maximum(mm(x, w1) + b1, 0.0)
    h = jnp.maximum(mm(h, w2) + b2, 0.0)

    # Fused actor/critic hidden layer: lanes [0:H) actor hidden, [H:2H) critic hidden.
    ac = jnp.maximum(mm(h, wh) + bh, 0.0)

    # Fused output: lanes [0:n_act) logits, lane n_act value; only OUT_W lanes stored.
    out = mm(ac, wo) + bo                            # [TB, 128]
    out_ref[...] = out[:, :out_ref.shape[-1]].astype(out_ref.dtype)


def init_params(key, obs_dim, hidden, n_actions):
    """Unpacked params: weights [in, out], biases [1, out]."""
    ks = jax.random.split(key, 12)
    w = lambda k, din, dout: jax.random.normal(k, (din, dout), jnp.float32) * 0.1
    b = lambda k, dout: jax.random.normal(k, (1, dout), jnp.float32) * 0.01
    return {
        "w1": w(ks[0], obs_dim, hidden), "b1": b(ks[1], hidden),
        "w2": w(ks[2], hidden, hidden),  "b2": b(ks[3], hidden),
        "wa1": w(ks[4], hidden, hidden), "ba1": b(ks[5], hidden),
        "wa2": w(ks[6], hidden, n_actions), "ba2": b(ks[7], n_actions),
        "wc1": w(ks[8], hidden, hidden), "bc1": b(ks[9], hidden),
        "wc2": w(ks[10], hidden, 1),     "bc2": b(ks[11], 1),
    }


def pack_params(p, obs_dim, hidden, n_actions):
    """Pack all weights/biases into a single zero-padded [520, 128] slab."""
    H, L = hidden, LANE
    assert _round_up(obs_dim, 8) <= L and 2 * H <= L and n_actions + 1 <= OUT_W

    def padw(w):
        out = jnp.zeros((L, L), jnp.float32)
        return out.at[:w.shape[0], :w.shape[1]].set(w)

    w1 = padw(p["w1"])                                            # [obs->H] padded
    w2 = padw(p["w2"])                                            # [H->H]   padded
    wh = padw(jnp.concatenate([p["wa1"], p["wc1"]], axis=1))      # [H->2H]  fused heads
    wo = jnp.zeros((L, L), jnp.float32)                           # block-diagonal output
    wo = wo.at[:H, :n_actions].set(p["wa2"])
    wo = wo.at[H:2 * H, n_actions:n_actions + 1].set(p["wc2"])

    bias = jnp.zeros((BIAS_ROWS, L), jnp.float32)
    bias = bias.at[0, :H].set(p["b1"][0])
    bias = bias.at[1, :H].set(p["b2"][0])
    bias = bias.at[2, :H].set(p["ba1"][0])
    bias = bias.at[2, H:2 * H].set(p["bc1"][0])
    bias = bias.at[3, :n_actions].set(p["ba2"][0])
    bias = bias.at[3, n_actions:n_actions + 1].set(p["bc2"][0])

    return jnp.concatenate([w1, w2, wh, wo, bias], axis=0)        # [520, 128]


@functools.partial(jax.jit, static_argnames=("n_actions", "block_b", "compute_dtype"))
def actor_critic_forward(x, param_slab, *, n_actions, block_b=1024,
                         compute_dtype=jnp.float32):
    """x: [B, obs_dim] float32 -> (logits [B, n_actions], value [B, 1])."""
    B, obs = x.shape
    obs_p = _round_up(obs, 8)
    if obs_p != obs:                       # only pads when obs % 8 != 0 (not here)
        x = jnp.pad(x, ((0, 0), (0, obs_p - obs)))

    # Batch tile: multiple of 8, capped at block_b, and chosen so the grid has
    # >= 2 steps whenever B > 8 (lets the "parallel" axis shard across v7x's 2 TCs).
    if B <= 8:
        TB = B                             # single block == full array dims (legal)
    else:
        TB = min(block_b, _round_up(-(-B // 2), 8))
    grid = pl.cdiv(B, TB)

    out = pl.pallas_call(
        functools.partial(actor_critic_kernel, compute_dtype=compute_dtype),
        out_shape=jax.ShapeDtypeStruct((B, OUT_W), jnp.float32),
        grid_spec=pltpu.PrefetchScalarGridSpec(
            num_scalar_prefetch=0,
            grid=(grid,),
            in_specs=[
                pl.BlockSpec((TB, obs_p), lambda i: (i, 0)),            # x tile
                pl.BlockSpec((SLAB_ROWS, LANE), lambda i: (0, 0)),      # resident params
            ],
            out_specs=pl.BlockSpec((TB, OUT_W), lambda i: (i, 0)),
        ),
        compiler_params=pltpu.CompilerParams(
            dimension_semantics=("parallel",),
            # NOTE: at block_b <= ~2048 everything fits well under the default
            # scoped VMEM limit on all generations (incl. v7x's 64 MiB); set
            # vmem_limit_bytes explicitly only if TB is pushed far beyond that.
        ),
    )(x, param_slab)

    head = out[:, :n_actions + 1]          # single slice of the narrow output
    return head[:, :n_actions], head[:, n_actions:n_actions + 1]


def reference_forward(x, p):
    relu = lambda z: jnp.maximum(z, 0.0)
    h = relu(x @ p["w1"] + p["b1"])
    h = relu(h @ p["w2"] + p["b2"])
    a = relu(h @ p["wa1"] + p["ba1"])
    logits = a @ p["wa2"] + p["ba2"]
    c = relu(h @ p["wc1"] + p["bc1"])
    value = c @ p["wc2"] + p["bc2"]
    return logits, value


if __name__ == "__main__":
    OBS, HIDDEN, N_ACT = 16, 64, 4     # discrete action space (Categorical head)
    key = jax.random.PRNGKey(0)
    kp, *kxs = jax.random.split(key, 5)

    params = init_params(kp, OBS, HIDDEN, N_ACT)
    slab = pack_params(params, OBS, HIDDEN, N_ACT)

    # B=1 (get_action path, single sub-8 block), B=8 (single block), B=50
    # (2 grid steps + partial last block), B=300 (2 steps, ragged split).
    for B, kx in zip((1, 8, 50, 300), kxs):
        x = jax.random.normal(kx, (B, OBS), jnp.float32)
        logits, value = actor_critic_forward(x, slab, n_actions=N_ACT)
        jax.block_until_ready((logits, value))

        ref_logits, ref_value = reference_forward(x, params)
        assert logits.shape == (B, N_ACT) and value.shape == (B, 1)
        assert jnp.allclose(logits, ref_logits, atol=1e-4, rtol=1e-4)
        assert jnp.allclose(value, ref_value, atol=1e-4, rtol=1e-4)

    # TODO(synk): get_action / evaluate_actions (Categorical/Normal sampling,
    # log_prob, entropy, clamping) are distribution-level glue outside the
    # forward hot path; not implemented in-kernel.
    print("KERNEL_OK")
</pallas_src>

<mosaic_0001>
module attributes {stable_mosaic.version = 11 : i64} {
  func.func @actor_critic_kernel(%arg0: i32, %arg1: memref<1x16xf32, #tpu.memory_space<vmem>>, %arg2: memref<520x128xf32, #tpu.memory_space<vmem>>, %arg3: memref<1x8xf32, #tpu.memory_space<vmem>>) attributes {dimension_semantics = [#tpu.dimension_semantics<parallel>], iteration_bounds = array<i64: 1>, scalar_prefetch = 0 : i64, scratch_operands = 0 : i64, tpu.core_type = #tpu.core_type<tc>, window_params = [{transform_indices = @transform_0, window_bounds = array<i64: 1, 16>}, {pipeline_mode = #tpu.pipeline_mode<synchronous>, transform_indices = @transform_1, window_bounds = array<i64: 520, 128>}, {transform_indices = @transform_2, window_bounds = array<i64: 1, 8>}]} {
    %c0 = arith.constant 0 : index
    %c0_0 = arith.constant 0 : index
    %0 = vector.load %arg1[%c0, %c0_0] : memref<1x16xf32, #tpu.memory_space<vmem>>, vector<1x16xf32>
    %c0_1 = arith.constant 0 : index
    %c0_2 = arith.constant 0 : index
    %1 = vector.load %arg2[%c0_1, %c0_2] : memref<520x128xf32, #tpu.memory_space<vmem>>, vector<16x128xf32>
    %c128 = arith.constant 128 : index
    %c0_3 = arith.constant 0 : index
    %2 = vector.load %arg2[%c128, %c0_3] : memref<520x128xf32, #tpu.memory_space<vmem>>, vector<128x128xf32>
    %c256 = arith.constant 256 : index
    %c0_4 = arith.constant 0 : index
    %3 = vector.load %arg2[%c256, %c0_4] : memref<520x128xf32, #tpu.memory_space<vmem>>, vector<128x128xf32>
    %c384 = arith.constant 384 : index
    %c0_5 = arith.constant 0 : index
    %4 = vector.load %arg2[%c384, %c0_5] : memref<520x128xf32, #tpu.memory_space<vmem>>, vector<128x128xf32>
    %c512 = arith.constant 512 : index
    %c0_6 = arith.constant 0 : index
    %5 = vector.load %arg2[%c512, %c0_6] : memref<520x128xf32, #tpu.memory_space<vmem>>, vector<8x128xf32>
    %6 = vector.extract_strided_slice %5 {offsets = [0, 0], sizes = [1, 128], strides = [1, 1]} : vector<8x128xf32> to vector<1x128xf32>
    %7 = vector.extract_strided_slice %5 {offsets = [1, 0], sizes = [1, 128], strides = [1, 1]} : vector<8x128xf32> to vector<1x128xf32>
    %8 = vector.extract_strided_slice %5 {offsets = [2, 0], sizes = [1, 128], strides = [1, 1]} : vector<8x128xf32> to vector<1x128xf32>
    %9 = vector.extract_strided_slice %5 {offsets = [3, 0], sizes = [1, 128], strides = [1, 1]} : vector<8x128xf32> to vector<1x128xf32>
    %cst = arith.constant dense<0.000000e+00> : vector<1x128xf32>
    %10 = tpu.matmul %0, %1, %cst {dimension_numbers = #tpu.dot_dimension_numbers<[1], [0], [0], [1], [0, 0, 1, 1], [], []>} : vector<1x16xf32>, vector<16x128xf32>, vector<1x128xf32> -> vector<1x128xf32>
    %11 = arith.addf %10, %6 : vector<1x128xf32>
    %cst_7 = arith.constant 0.000000e+00 : f32
    %12 = vector.broadcast %cst_7 : f32 to vector<1x128xf32>
    %13 = arith.maximumf %11, %12 : vector<1x128xf32>
    %cst_8 = arith.constant dense<0.000000e+00> : vector<1x128xf32>
    %14 = tpu.matmul %13, %2, %cst_8 {dimension_numbers = #tpu.dot_dimension_numbers<[1], [0], [0], [1], [0, 0, 1, 1], [], []>} : vector<1x128xf32>, vector<128x128xf32>, vector<1x128xf32> -> vector<1x128xf32>
    %15 = arith.addf %14, %7 : vector<1x128xf32>
    %cst_9 = arith.constant 0.000000e+00 : f32
    %16 = vector.broadcast %cst_9 : f32 to vector<1x128xf32>
    %17 = arith.maximumf %15, %16 : vector<1x128xf32>
    %cst_10 = arith.constant dense<0.000000e+00> : vector<1x128xf32>
    %18 = tpu.matmul %17, %3, %cst_10 {dimension_numbers = #tpu.dot_dimension_numbers<[1], [0], [0], [1], [0, 0, 1, 1], [], []>} : vector<1x128xf32>, vector<128x128xf32>, vector<1x128xf32> -> vector<1x128xf32>
    %19 = arith.addf %18, %8 : vector<1x128xf32>
    %cst_11 = arith.constant 0.000000e+00 : f32
    %20 = vector.broadcast %cst_11 : f32 to vector<1x128xf32>
    %21 = arith.maximumf %19, %20 : vector<1x128xf32>
    %cst_12 = arith.constant dense<0.000000e+00> : vector<1x128xf32>
    %22 = tpu.matmul %21, %4, %cst_12 {dimension_numbers = #tpu.dot_dimension_numbers<[1], [0], [0], [1], [0, 0, 1, 1], [], []>} : vector<1x128xf32>, vector<128x128xf32>, vector<1x128xf32> -> vector<1x128xf32>
    %23 = arith.addf %22, %9 : vector<1x128xf32>
    %24 = vector.extract_strided_slice %23 {offsets = [0, 0], sizes = [1, 8], strides = [1, 1]} : vector<1x128xf32> to vector<1x8xf32>
    %c0_13 = arith.constant 0 : index
    %c0_14 = arith.constant 0 : index
    %25 = vector.load %arg3[%c0_13, %c0_14] : memref<1x8xf32, #tpu.memory_space<vmem>>, vector<1x8xf32>
    tpu.vector_store %arg3[%c0_13, %c0_14], %24 {strides = array<i32>} : memref<1x8xf32, #tpu.memory_space<vmem>>, vector<1x8xf32>,
    return
  }
  func.func @transform_0(%arg0: i32) -> (i32, i32) {
    %c0_i32 = arith.constant 0 : i32
    %c0_i32_0 = arith.constant 0 : i32
    return %arg0, %c0_i32 : i32, i32
  }
  func.func @transform_1(%arg0: i32) -> (i32, i32) {
    %c0_i32 = arith.constant 0 : i32
    %c0_i32_0 = arith.constant 0 : i32
    %c0_i32_1 = arith.constant 0 : i32
    return %c0_i32, %c0_i32_0 : i32, i32
  }
  func.func @transform_2(%arg0: i32) -> (i32, i32) {
    %c0_i32 = arith.constant 0 : i32
    %c0_i32_0 = arith.constant 0 : i32
    return %arg0, %c0_i32 : i32, i32
  }
}

</mosaic_0001>

<llo_original>
// kernel: actor_critic_forward.1
$region0: #{actor_critic_forward.1}
  #allocation0 [shape = 'u32[]', space=smem, size = 0x4, offset = 0x4, fixed_abs, tag = 'smem constant byte address 0x4 - core index']
  #allocation1 [shape = 'u32[144,128]{1,0:T(1,128)}', space=vmem, size = 0x12000, scoped, tag = 'internal scratch']
  %s0 = inlined_call_operand.hbm [shape: f32[1,16], index: 0, kind: input, shape index: {}]
  %s1 = inlined_call_operand.hbm [shape: f32[520,128], index: 1, kind: input, shape index: {}]
  %s2 = inlined_call_operand.vmem [shape: f32[1,8], index: 2, kind: output, shape index: {}]
  %s3 = sld [smem:[#allocation0]]
  $region26: #{actor_critic_forward.1} parent=0
    _
  %s5 = ssub.s32 1, %s3
  %s6 = scalar_select 0, %s5, %s3
  $region1: #{actor_critic_forward.1} parent=0
    #allocation2 [shape = 'u8[512]{0}', space=vmem, size = 0x400, scoped, tag = 'input window, operand 0, single buffered']
    #allocation3 [shape = 's32[1]{0}', space=sflag, size = 0x4, scoped, tag = 'scoped memory for actor_critic_forward.1']
    #allocation4 [shape = 'u8[266240]{0}', space=vmem, size = 0x41000, scoped, tag = 'input window, operand 1, single buffered']
    #allocation5 [shape = 's32[1]{0}', space=sflag, size = 0x4, scoped, tag = 'scoped memory for actor_critic_forward.1']
    %7 = vsyncpa [#allocation3], 0
    %8 = vsyncpa [#allocation5], 0
    // Predicated region
    $region2: #{actor_critic_forward.1} parent=1 // pred_check
      _
    $region3: #{actor_critic_forward.1} parent=1 // pred_check_branch
      %10 = sbr.rel (0) target = $region5
    $region4: #{actor_critic_forward.1} parent=1 // pred_region
      %s12 = ssub.s32 16, 16
      %13 = vsyncadd [#allocation3], %s12
      %s15 = sshll.u32 [#allocation2], 4
      %s16 = int_to_ptr.vmem [resolvable:$true] %s15
      %18 = dma.hbm_to_vmem [thread:$0]  %s0, 16, %s16, [#allocation3]
    $region5: #{actor_critic_forward.1} parent=1 // pred_fallthru
      _
    // Predicated region
    $region6: #{actor_critic_forward.1} parent=1 // pred_check
      _
    $region7: #{actor_critic_forward.1} parent=1 // pred_check_branch
      %20 = sbr.rel (0) target = $region9
    $region8: #{actor_critic_forward.1} parent=1 // pred_region
      %s22 = ssub.s32 8320, 8320
      %23 = vsyncadd [#allocation5], %s22
      %s24 = sshll.u32 [#allocation4], 4
      %s25 = int_to_ptr.vmem [resolvable:$true] %s24
      %30 = dma.hbm_to_vmem [thread:$0]  %s1, 8320, %s25, [#allocation5], 128, 128, 8
    $region9: #{actor_critic_forward.1} parent=1 // pred_fallthru
      _
    // Predicated region
    $region10: #{actor_critic_forward.1} parent=1 // pred_check
      _
    $region11: #{actor_critic_forward.1} parent=1 // pred_check_branch
      %32 = sbr.rel (0) target = $region13
    $region12: #{actor_critic_forward.1} parent=1 // pred_region
      %33 = dma.done [#allocation3], 16
    $region13: #{actor_critic_forward.1} parent=1 // pred_fallthru
      _
    // Predicated region
    $region14: #{actor_critic_forward.1} parent=1 // pred_check
      _
    $region15: #{actor_critic_forward.1} parent=1 // pred_check_branch
      %35 = sbr.rel (0) target = $region17
    $region16: #{actor_critic_forward.1} parent=1 // pred_region
      %36 = dma.done [#allocation5], 8320
    $region17: #{actor_critic_forward.1} parent=1 // pred_fallthru
      _
    %v37 = vld [vmem:[#allocation2] sm:$0x1]
    %v38 = vld [vmem:[#allocation4] sm:$0xff]
    %v39 = vld [vmem:[#allocation4 + $0x8] sm:$0xff]
    %v40 = vld [vmem:[#allocation4 + $0x80] sm:$0xff]
    %v41 = vld [vmem:[#allocation4 + $0x88] sm:$0xff]
    %v42 = vld [vmem:[#allocation4 + $0x90] sm:$0xff]
    %v43 = vld [vmem:[#allocation4 + $0x98] sm:$0xff]
    %v44 = vld [vmem:[#allocation4 + $0xa0] sm:$0xff]
    %v45 = vld [vmem:[#allocation4 + $0xa8] sm:$0xff]
    %v46 = vld [vmem:[#allocation4 + $0xb0] sm:$0xff]
    %v47 = vld [vmem:[#allocation4 + $0xb8] sm:$0xff]
    %v48 = vld [vmem:[#allocation4 + $0xc0] sm:$0xff]
    %v49 = vld [vmem:[#allocation4 + $0xc8] sm:$0xff]
    %v50 = vld [vmem:[#allocation4 + $0xd0] sm:$0xff]
    %v51 = vld [vmem:[#allocation4 + $0xd8] sm:$0xff]
    %v52 = vld [vmem:[#allocation4 + $0xe0] sm:$0xff]
    %v53 = vld [vmem:[#allocation4 + $0xe8] sm:$0xff]
    %v54 = vld [vmem:[#allocation4 + $0xf0] sm:$0xff]
    %v55 = vld [vmem:[#allocation4 + $0xf8] sm:$0xff]
    %v56 = vld [vmem:[#allocation4 + $0x100] sm:$0xff]
    %v57 = vld [vmem:[#allocation4 + $0x108] sm:$0xff]
    %v58 = vld [vmem:[#allocation4 + $0x110] sm:$0xff]
    %v59 = vld [vmem:[#allocation4 + $0x118] sm:$0xff]
    %v60 = vld [vmem:[#allocation4 + $0x120] sm:$0xff]
    %v61 = vld [vmem:[#allocation4 + $0x128] sm:$0xff]
    %v62 = vld [vmem:[#allocation4 + $0x130] sm:$0xff]
    %v63 = vld [vmem:[#allocation4 + $0x138] sm:$0xff]
    %v64 = vld [vmem:[#allocation4 + $0x140] sm:$0xff]
    %v65 = vld [vmem:[#allocation4 + $0x148] sm:$0xff]
    %v66 = vld [vmem:[#allocation4 + $0x150] sm:$0xff]
    %v67 = vld [vmem:[#allocation4 + $0x158] sm:$0xff]
    %v68 = vld [vmem:[#allocation4 + $0x160] sm:$0xff]
    %v69 = vld [vmem:[#allocation4 + $0x168] sm:$0xff]
    %v70 = vld [vmem:[#allocation4 + $0x170] sm:$0xff]
    %v71 = vld [vmem:[#allocation4 + $0x178] sm:$0xff]
    %v72 = vld [vmem:[#allocation4 + $0x180] sm:$0xff]
    %v73 = vld [vmem:[#allocation4 + $0x188] sm:$0xff]
    %v74 = vld [vmem:[#allocation4 + $0x190] sm:$0xff]
    %v75 = vld [vmem:[#allocation4 + $0x198] sm:$0xff]
    %v76 = vld [vmem:[#allocation4 + $0x1a0] sm:$0xff]
    %v77 = vld [vmem:[#allocation4 + $0x1a8] sm:$0xff]
    %v78 = vld [vmem:[#allocation4 + $0x1b0] sm:$0xff]
    %v79 = vld [vmem:[#allocation4 + $0x1b8] sm:$0xff]
    %v80 = vld [vmem:[#allocation4 + $0x1c0] sm:$0xff]
    %v81 = vld [vmem:[#allocation4 + $0x1c8] sm:$0xff]
    %v82 = vld [vmem:[#allocation4 + $0x1d0] sm:$0xff]
    %v83 = vld [vmem:[#allocation4 + $0x1d8] sm:$0xff]
    %v84 = vld [vmem:[#allocation4 + $0x1e0] sm:$0xff]
    %v85 = vld [vmem:[#allocation4 + $0x1e8] sm:$0xff]
    %v86 = vld [vmem:[#allocation4 + $0x1f0] sm:$0xff]
    %v87 = vld [vmem:[#allocation4 + $0x1f8] sm:$0xff]
    %v88 = vld [vmem:[#allocation4 + $0x200] sm:$0xff]
    %vm89 = vcmask 130048
    %v91 = vsel %vm89, %v37, 0
    %93 = vmatprep.subr.mxu0 0.0
    %94 = vmatpush1.msra.mxu0 0.0
    %95 = vmatprep.subr.mxu0 0.0
    %96 = vmatpush1.msra.mxu0 0.0
    %97 = vmatprep.subr.mxu0 0.0
    %98 = vmatpush1.msra.mxu0 0.0
    %99 = vmatprep.subr.mxu0 0.0
    %100 = vmatpush1.msra.mxu0 0.0
    %101 = vmatprep.subr.mxu0 0.0
    %102 = vmatpush1.msra.mxu0 0.0
    %103 = vmatprep.subr.mxu0 0.0
    %104 = vmatpush1.msra.mxu0 0.0
    %105 = vmatprep.subr.mxu0 0.0
    %106 = vmatpush1.msra.mxu0 0.0
    %107 = vmatprep.subr.mxu0 0.0
    %108 = vmatpush1.msra.mxu0 0.0
    %109 = vmatprep.subr.mxu0 0.0
    %110 = vmatpush1.msra.mxu0 0.0
    %111 = vmatprep.subr.mxu0 0.0
    %112 = vmatpush1.msra.mxu0 0.0
    %113 = vmatprep.subr.mxu0 0.0
    %114 = vmatpush1.msra.mxu0 0.0
    %115 = vmatprep.subr.mxu0 0.0
    %116 = vmatpush1.msra.mxu0 0.0
    %117 = vmatprep.subr.mxu0 0.0
    %118 = vmatpush1.msra.mxu0 0.0
    %119 = vmatprep.subr.mxu0 0.0
    %120 = vmatpush1.msra.mxu0 0.0
    %121 = vmatprep.subr.mxu0 0.0
    %122 = vmatpush1.msra.mxu0 %v39
    %123 = vmatprep.subr.mxu0 0.0
    %124 = vmatpush1.msra.mxu0 %v38
    %125 = vmatprep.subr.mxu0 0.0
    %126 = vmatpush2.msra.mxu0 0.0
    %127 = vmatprep.subr.mxu0 0.0
    %128 = vmatpush2.msra.mxu0 0.0
    %129 = vmatprep.subr.mxu0 0.0
    %130 = vmatpush2.msra.mxu0 0.0
    %131 = vmatprep.subr.mxu0 0.0
    %132 = vmatpush2.msra.mxu0 0.0
    %133 = vmatprep.subr.mxu0 0.0
    %134 = vmatpush2.msra.mxu0 0.0
    %135 = vmatprep.subr.mxu0 0.0
    %136 = vmatpush2.msra.mxu0 0.0
    %137 = vmatprep.subr.mxu0 0.0
    %138 = vmatpush2.msra.mxu0 0.0
    %139 = vmatprep.subr.mxu0 0.0
    %140 = vmatpush2.msra.mxu0 0.0
    %141 = vmatprep.subr.mxu0 0.0
    %142 = vmatpush2.msra.mxu0 0.0
    %143 = vmatprep.subr.mxu0 0.0
    %144 = vmatpush2.msra.mxu0 0.0
    %145 = vmatprep.subr.mxu0 0.0
    %146 = vmatpush2.msra.mxu0 0.0
    %147 = vmatprep.subr.mxu0 0.0
    %148 = vmatpush2.msra.mxu0 0.0
    %149 = vmatprep.subr.mxu0 0.0
    %150 = vmatpush2.msra.mxu0 0.0
    %151 = vmatprep.subr.mxu0 0.0
    %152 = vmatpush2.msra.mxu0 0.0
    %153 = vmatprep.subr.mxu0 0.0
    %154 = vmatpush2.msra.mxu0 0.0
    %155 = vmatprep.subr.mxu0 0.0
    %156 = vmatpush2.msra.mxu0 0.0
    %157 = vmatprep.mubr.f32.mxu0 0.0
    %158 = vmatmul.mubr.f32.gmra.mxu0 %v91
    %v159 = vpop.f32.mrf.mxu0
    %v160 = vadd.f32 %v88, %v159
    %v161 = vpop.f32.mrf.mxu0
    %162 = vdwg.mxu0
    %v163 = vmax.f32 %v160, 0.0
    %v165 = vrot.slane %v88, 1
    %167 = vmatprep.subr.mxu0 0.0
    %168 = vmatpush1.msra.mxu0 %v55
    %169 = vmatprep.subr.mxu0 0.0
    %170 = vmatpush1.msra.mxu0 %v54
    %171 = vmatprep.subr.mxu0 0.0
    %172 = vmatpush1.msra.mxu0 %v53
    %173 = vmatprep.subr.mxu0 0.0
    %174 = vmatpush1.msra.mxu0 %v52
    %175 = vmatprep.subr.mxu0 0.0
    %176 = vmatpush1.msra.mxu0 %v51
    %177 = vmatprep.subr.mxu0 0.0
    %178 = vmatpush1.msra.mxu0 %v50
    %179 = vmatprep.subr.mxu0 0.0
    %180 = vmatpush1.msra.mxu0 %v49
    %181 = vmatprep.subr.mxu0 0.0
    %182 = vmatpush1.msra.mxu0 %v48
    %183 = vmatprep.subr.mxu0 0.0
    %184 = vmatpush1.msra.mxu0 %v47
    %185 = vmatprep.subr.mxu0 0.0
    %186 = vmatpush1.msra.mxu0 %v46
    %187 = vmatprep.subr.mxu0 0.0
    %188 = vmatpush1.msra.mxu0 %v45
    %189 = vmatprep.subr.mxu0 0.0
    %190 = vmatpush1.msra.mxu0 %v44
    %191 = vmatprep.subr.mxu0 0.0
    %192 = vmatpush1.msra.mxu0 %v43
    %193 = vmatprep.subr.mxu0 0.0
    %194 = vmatpush1.msra.mxu0 %v42
    %195 = vmatprep.subr.mxu0 0.0
    %196 = vmatpush1.msra.mxu0 %v41
    %197 = vmatprep.subr.mxu0 0.0
    %198 = vmatpush1.msra.mxu0 %v40
    %199 = vmatprep.subr.mxu0 0.0
    %200 = vmatpush2.msra.mxu0 0.0
    %201 = vmatprep.subr.mxu0 0.0
    %202 = vmatpush2.msra.mxu0 0.0
    %203 = vmatprep.subr.mxu0 0.0
    %204 = vmatpush2.msra.mxu0 0.0
    %205 = vmatprep.subr.mxu0 0.0
    %206 = vmatpush2.msra.mxu0 0.0
    %207 = vmatprep.subr.mxu0 0.0
    %208 = vmatpush2.msra.mxu0 0.0
    %209 = vmatprep.subr.mxu0 0.0
    %210 = vmatpush2.msra.mxu0 0.0
    %211 = vmatprep.subr.mxu0 0.0
    %212 = vmatpush2.msra.mxu0 0.0
    %213 = vmatprep.subr.mxu0 0.0
    %214 = vmatpush2.msra.mxu0 0.0
    %215 = vmatprep.subr.mxu0 0.0
    %216 = vmatpush2.msra.mxu0 0.0
    %217 = vmatprep.subr.mxu0 0.0
    %218 = vmatpush2.msra.mxu0 0.0
    %219 = vmatprep.subr.mxu0 0.0
    %220 = vmatpush2.msra.mxu0 0.0
    %221 = vmatprep.subr.mxu0 0.0
    %222 = vmatpush2.msra.mxu0 0.0
    %223 = vmatprep.subr.mxu0 0.0
    %224 = vmatpush2.msra.mxu0 0.0
    %225 = vmatprep.subr.mxu0 0.0
    %226 = vmatpush2.msra.mxu0 0.0
    %227 = vmatprep.subr.mxu0 0.0
    %228 = vmatpush2.msra.mxu0 0.0
    %229 = vmatprep.subr.mxu0 0.0
    %230 = vmatpush2.msra.mxu0 0.0
    %231 = vmatprep.mubr.f32.mxu0 0.0
    %232 = vmatmul.mubr.f32.gmra.mxu0 %v163
    %v233 = vpop.f32.mrf.mxu0
    %v234 = vadd.f32 %v165, %v233
    %v235 = vpop.f32.mrf.mxu0
    %236 = vdwg.mxu0
    %v237 = vmax.f32 %v234, 0.0
    %v238 = vrot.slane %v88, 2
    %240 = vmatprep.subr.mxu0 0.0
    %241 = vmatpush1.msra.mxu0 %v71
    %242 = vmatprep.subr.mxu0 0.0
    %243 = vmatpush1.msra.mxu0 %v70
    %244 = vmatprep.subr.mxu0 0.0
    %245 = vmatpush1.msra.mxu0 %v69
    %246 = vmatprep.subr.mxu0 0.0
    %247 = vmatpush1.msra.mxu0 %v68
    %248 = vmatprep.subr.mxu0 0.0
    %249 = vmatpush1.msra.mxu0 %v67
    %250 = vmatprep.subr.mxu0 0.0
    %251 = vmatpush1.msra.mxu0 %v66
    %252 = vmatprep.subr.mxu0 0.0
    %253 = vmatpush1.msra.mxu0 %v65
    %254 = vmatprep.subr.mxu0 0.0
    %255 = vmatpush1.msra.mxu0 %v64
    %256 = vmatprep.subr.mxu0 0.0
    %257 = vmatpush1.msra.mxu0 %v63
    %258 = vmatprep.subr.mxu0 0.0
    %259 = vmatpush1.msra.mxu0 %v62
    %260 = vmatprep.subr.mxu0 0.0
    %261 = vmatpush1.msra.mxu0 %v61
    %262 = vmatprep.subr.mxu0 0.0
    %263 = vmatpush1.msra.mxu0 %v60
    %264 = vmatprep.subr.mxu0 0.0
    %265 = vmatpush1.msra.mxu0 %v59
    %266 = vmatprep.subr.mxu0 0.0
    %267 = vmatpush1.msra.mxu0 %v58
    %268 = vmatprep.subr.mxu0 0.0
    %269 = vmatpush1.msra.mxu0 %v57
    %270 = vmatprep.subr.mxu0 0.0
    %271 = vmatpush1.msra.mxu0 %v56
    %272 = vmatprep.subr.mxu0 0.0
    %273 = vmatpush2.msra.mxu0 0.0
    %274 = vmatprep.subr.mxu0 0.0
    %275 = vmatpush2.msra.mxu0 0.0
    %276 = vmatprep.subr.mxu0 0.0
    %277 = vmatpush2.msra.mxu0 0.0
    %278 = vmatprep.subr.mxu0 0.0
    %279 = vmatpush2.msra.mxu0 0.0
    %280 = vmatprep.subr.mxu0 0.0
    %281 = vmatpush2.msra.mxu0 0.0
    %282 = vmatprep.subr.mxu0 0.0
    %283 = vmatpush2.msra.mxu0 0.0
    %284 = vmatprep.subr.mxu0 0.0
    %285 = vmatpush2.msra.mxu0 0.0
    %286 = vmatprep.subr.mxu0 0.0
    %287 = vmatpush2.msra.mxu0 0.0
    %288 = vmatprep.subr.mxu0 0.0
    %289 = vmatpush2.msra.mxu0 0.0
    %290 = vmatprep.subr.mxu0 0.0
    %291 = vmatpush2.msra.mxu0 0.0
    %292 = vmatprep.subr.mxu0 0.0
    %293 = vmatpush2.msra.mxu0 0.0
    %294 = vmatprep.subr.mxu0 0.0
    %295 = vmatpush2.msra.mxu0 0.0
    %296 = vmatprep.subr.mxu0 0.0
    %297 = vmatpush2.msra.mxu0 0.0
    %298 = vmatprep.subr.mxu0 0.0
    %299 = vmatpush2.msra.mxu0 0.0
    %300 = vmatprep.subr.mxu0 0.0
    %301 = vmatpush2.msra.mxu0 0.0
    %302 = vmatprep.subr.mxu0 0.0
    %303 = vmatpush2.msra.mxu0 0.0
    %304 = vmatprep.mubr.f32.mxu0 0.0
    %305 = vmatmul.mubr.f32.gmra.mxu0 %v237
    %v306 = vpop.f32.mrf.mxu0
    %v307 = vadd.f32 %v238, %v306
    %v308 = vpop.f32.mrf.mxu0
    %309 = vdwg.mxu0
    %v310 = vmax.f32 %v307, 0.0
    %v311 = vrot.slane %v88, 3
    %313 = vmatprep.subr.mxu0 0.0
    %314 = vmatpush1.msra.mxu0 %v87
    %315 = vmatprep.subr.mxu0 0.0
    %316 = vmatpush1.msra.mxu0 %v86
    %317 = vmatprep.subr.mxu0 0.0
    %318 = vmatpush1.msra.mxu0 %v85
    %319 = vmatprep.subr.mxu0 0.0
    %320 = vmatpush1.msra.mxu0 %v84
    %321 = vmatprep.subr.mxu0 0.0
    %322 = vmatpush1.msra.mxu0 %v83
    %323 = vmatprep.subr.mxu0 0.0
    %324 = vmatpush1.msra.mxu0 %v82
    %325 = vmatprep.subr.mxu0 0.0
    %326 = vmatpush1.msra.mxu0 %v81
    %327 = vmatprep.subr.mxu0 0.0
    %328 = vmatpush1.msra.mxu0 %v80
    %329 = vmatprep.subr.mxu0 0.0
    %330 = vmatpush1.msra.mxu0 %v79
    %331 = vmatprep.subr.mxu0 0.0
    %332 = vmatpush1.msra.mxu0 %v78
    %333 = vmatprep.subr.mxu0 0.0
    %334 = vmatpush1.msra.mxu0 %v77
    %335 = vmatprep.subr.mxu0 0.0
    %336 = vmatpush1.msra.mxu0 %v76
    %337 = vmatprep.subr.mxu0 0.0
    %338 = vmatpush1.msra.mxu0 %v75
    %339 = vmatprep.subr.mxu0 0.0
    %340 = vmatpush1.msra.mxu0 %v74
    %341 = vmatprep.subr.mxu0 0.0
    %342 = vmatpush1.msra.mxu0 %v73
    %343 = vmatprep.subr.mxu0 0.0
    %344 = vmatpush1.msra.mxu0 %v72
    %345 = vmatprep.subr.mxu0 0.0
    %346 = vmatpush2.msra.mxu0 0.0
    %347 = vmatprep.subr.mxu0 0.0
    %348 = vmatpush2.msra.mxu0 0.0
    %349 = vmatprep.subr.mxu0 0.0
    %350 = vmatpush2.msra.mxu0 0.0
    %351 = vmatprep.subr.mxu0 0.0
    %352 = vmatpush2.msra.mxu0 0.0
    %353 = vmatprep.subr.mxu0 0.0
    %354 = vmatpush2.msra.mxu0 0.0
    %355 = vmatprep.subr.mxu0 0.0
    %356 = vmatpush2.msra.mxu0 0.0
    %357 = vmatprep.subr.mxu0 0.0
    %358 = vmatpush2.msra.mxu0 0.0
    %359 = vmatprep.subr.mxu0 0.0
    %360 = vmatpush2.msra.mxu0 0.0
    %361 = vmatprep.subr.mxu0 0.0
    %362 = vmatpush2.msra.mxu0 0.0
    %363 = vmatprep.subr.mxu0 0.0
    %364 = vmatpush2.msra.mxu0 0.0
    %365 = vmatprep.subr.mxu0 0.0
    %366 = vmatpush2.msra.mxu0 0.0
    %367 = vmatprep.subr.mxu0 0.0
    %368 = vmatpush2.msra.mxu0 0.0
    %369 = vmatprep.subr.mxu0 0.0
    %370 = vmatpush2.msra.mxu0 0.0
    %371 = vmatprep.subr.mxu0 0.0
    %372 = vmatpush2.msra.mxu0 0.0
    %373 = vmatprep.subr.mxu0 0.0
    %374 = vmatpush2.msra.mxu0 0.0
    %375 = vmatprep.subr.mxu0 0.0
    %376 = vmatpush2.msra.mxu0 0.0
    %377 = vmatprep.mubr.f32.mxu0 0.0
    %378 = vmatmul.mubr.f32.gmra.mxu0 %v310
    %v379 = vpop.f32.mrf.mxu0
    %v380 = vadd.f32 %v311, %v379
    %v381 = vpop.f32.mrf.mxu0
    %382 = vdwg.mxu0
    %vm383 = vcmask 57344
    %384 = vst.msk [vmem:[%s2] sm:$0x1] %vm383, %v380
    // Predicated region
    $region18: #{actor_critic_forward.1} parent=1 // pred_check
      _
    $region19: #{actor_critic_forward.1} parent=1 // pred_check_branch
      %386 = sbr.rel (0) target = $region21
    $region20: #{actor_critic_forward.1} parent=1 // pred_region
      _
    $region21: #{actor_critic_forward.1} parent=1 // pred_fallthru
      _
    // Predicated region
    $region22: #{actor_critic_forward.1} parent=1 // pred_check
      _
    $region23: #{actor_critic_forward.1} parent=1 // pred_check_branch
      %388 = sbr.rel (0) target = $region25
    $region24: #{actor_critic_forward.1} parent=1 // pred_region
      _
    $region25: #{actor_critic_forward.1} parent=1 // pred_fallthru
      _
    %389 = vsyncpa [#allocation3], 1
    %390 = vsyncpa [#allocation5], 1

</llo_original>
